<compile_context>
chip_gen: v5e
topology: v5e:2x2
jax: 0.10.0
libtpu: 0.0.40
codegen_flags: <defaults>
</compile_context>

<pallas_src>
import jax
import jax.numpy as jnp
from jax.experimental import pallas as pl
from jax.experimental.pallas import tpu as pltpu


def _round_up(x, m):
    return ((x + m - 1) // m) * m


def _embed_kernel(ids_ref, emb_hbm, mat_t_ref, out_ref, e_buf, sem):
    """One grid step handles one tile of `tile_tokens` tokens.

    ids_ref   : SMEM (N_pad,) int32        -- scalar-prefetched token ids
    emb_hbm   : HBM  (V, D) f32            -- embedding table (never fully in VMEM)
    mat_t_ref : VMEM (D, S) f32            -- projection weight, already transposed
    out_ref   : VMEM (tile_tokens, S) f32
    e_buf     : VMEM (tile_tokens, D) f32  -- gathered embedding rows
    sem       : shared DMA semaphore for the row-gather copies of this tile
    """
    t = pl.program_id(0)
    tile_tokens = e_buf.shape[0]
    base = t * tile_tokens

    # Issue all row-gather DMAs for this tile (kept in flight simultaneously).
    for j in range(tile_tokens):
        tok = ids_ref[base + j]
        pltpu.make_async_copy(emb_hbm.at[tok], e_buf.at[j], sem).start()

    # Wait for all of them (equal-sized copies sharing one semaphore, so after
    # this loop every row DMA has completed).
    for j in range(tile_tokens):
        pltpu.make_async_copy(emb_hbm.at[0], e_buf.at[j], sem).wait()

    # Projection on the MXU: (tile_tokens, D) @ (D, S) -> (tile_tokens, S).
    out_ref[...] = jnp.dot(e_buf[...], mat_t_ref[...],
                           preferred_element_type=jnp.float32)


def embed_forward(x, emb_table, mat, *, tokens_per_tile=128):
    """x: (B, L) int ids; emb_table: (V, D) f32; mat: (S, D) f32 -> (B, L, S)."""
    B, L = x.shape
    V, D = emb_table.shape
    S, D2 = mat.shape
    assert D == D2

    N = B * L
    # Token tile: multiple of 8 (f32 sublane), capped at tokens_per_tile.
    tile_tokens = min(tokens_per_tile, _round_up(N, 8))
    n_pad = _round_up(N, tile_tokens)
    num_tiles = n_pad // tile_tokens

    # Ids as flat int32 in SMEM (scalar prefetch); clamp for safety; pad rows
    # gather row 0 and are sliced off below.
    ids = jnp.clip(x.reshape(-1).astype(jnp.int32), 0, V - 1)
    ids = jnp.pad(ids, (0, n_pad - N))

    # Hoist the transpose of mat out of the kernel (done once in XLA).
    mat_t = mat.T  # (D, S)

    out = pl.pallas_call(
        _embed_kernel,
        out_shape=jax.ShapeDtypeStruct((n_pad, S), jnp.float32),
        grid_spec=pltpu.PrefetchScalarGridSpec(
            num_scalar_prefetch=1,
            grid=(num_tiles,),
            in_specs=[
                # Embedding table stays in HBM; rows are gathered by manual DMA.
                pl.BlockSpec(memory_space=pl.ANY),
                # mat.T resident in VMEM across all grid steps.
                pl.BlockSpec((D, S), lambda t, ids: (0, 0)),
            ],
            out_specs=pl.BlockSpec((tile_tokens, S), lambda t, ids: (t, 0)),
            scratch_shapes=[
                pltpu.VMEM((tile_tokens, D), jnp.float32),
                pltpu.SemaphoreType.DMA(()),
            ],
        ),
        compiler_params=pltpu.CompilerParams(
            dimension_semantics=("parallel",)),
    )(ids, emb_table, mat_t)

    return out[:N].reshape(B, L, S)


if __name__ == "__main__":
    # Small shapes consistent with the module's forward.
    batch, length = 2, 8
    vocab = 32
    input_size = 128   # embedding dim
    size = 128         # projection output dim

    key = jax.random.PRNGKey(0)
    k_ids, k_emb, k_mat = jax.random.split(key, 3)

    x = jax.random.randint(k_ids, (batch, length), 0, vocab, dtype=jnp.int32)
    # nn.Embedding weight and `mat` are both init'd with normal_() in PyTorch.
    emb_table = jax.random.normal(k_emb, (vocab, input_size), dtype=jnp.float32)
    mat = jax.random.normal(k_mat, (size, input_size), dtype=jnp.float32)

    out = embed_forward(x, emb_table, mat)
    out = jax.block_until_ready(out)

    # Reference check (pure JAX).
    ref = (emb_table[x.reshape(-1)] @ mat.T).reshape(batch, length, size)
    assert out.shape == (batch, length, size)
    assert jnp.allclose(out, ref, atol=1e-4, rtol=1e-4)

    print("KERNEL_OK")
</pallas_src>

<mosaic_0001>
module attributes {stable_mosaic.version = 11 : i64} {
  func.func @_embed_kernel(%arg0: i32, %arg1: memref<16xi32, #tpu.memory_space<smem>>, %arg2: memref<32x128xf32, #tpu.memory_space<any>>, %arg3: memref<128x128xf32, #tpu.memory_space<vmem>>, %arg4: memref<16x128xf32, #tpu.memory_space<vmem>>, %arg5: memref<16x128xf32, #tpu.memory_space<vmem>>, %arg6: memref<!tpu.dma_semaphore, #tpu.memory_space<semaphore_mem>>) attributes {dimension_semantics = [#tpu.dimension_semantics<parallel>], iteration_bounds = array<i64: 1>, scalar_prefetch = 1 : i64, scratch_operands = 2 : i64, tpu.core_type = #tpu.core_type<tc>, window_params = [{}, {pipeline_mode = #tpu.pipeline_mode<synchronous>, transform_indices = @transform_1, window_bounds = array<i64: 128, 128>}, {transform_indices = @transform_2, window_bounds = array<i64: 16, 128>}]} {
    %c16_i32 = arith.constant 16 : i32
    %0 = arith.muli %arg0, %c16_i32 : i32
    %c0_i32 = arith.constant 0 : i32
    %1 = arith.addi %0, %c0_i32 : i32
    %2 = arith.index_cast %1 : i32 to index
    %3 = memref.load %arg1[%2] : memref<16xi32, #tpu.memory_space<smem>>
    %c0_i32_0 = arith.constant 0 : i32
    %c0_i32_1 = arith.constant 0 : i32
    %4 = tpu.memref_slice %arg2[%3, %c0_i32_1] : memref<32x128xf32, #tpu.memory_space<any>> -> memref<1x128xf32, #tpu.memory_space<any>>
    %5 = tpu.memref_squeeze %4 : memref<1x128xf32, #tpu.memory_space<any>> -> memref<128xf32, #tpu.memory_space<any>>
    %c0_i32_2 = arith.constant 0 : i32
    %6 = tpu.memref_slice %arg5[%c0_i32_0, %c0_i32_2] : memref<16x128xf32, #tpu.memory_space<vmem>> -> memref<1x128xf32, #tpu.memory_space<vmem>>
    %7 = tpu.memref_squeeze %6 : memref<1x128xf32, #tpu.memory_space<vmem>> -> memref<128xf32, #tpu.memory_space<vmem>>
    tpu.enqueue_dma source(%5 : memref<128xf32, #tpu.memory_space<any>>) target(%7 : memref<128xf32, #tpu.memory_space<vmem>>) target_semaphore(%arg6 : memref<!tpu.dma_semaphore, #tpu.memory_space<semaphore_mem>>)
    %c1_i32 = arith.constant 1 : i32
    %8 = arith.addi %0, %c1_i32 : i32
    %9 = arith.index_cast %8 : i32 to index
    %10 = memref.load %arg1[%9] : memref<16xi32, #tpu.memory_space<smem>>
    %c1_i32_3 = arith.constant 1 : i32
    %c0_i32_4 = arith.constant 0 : i32
    %11 = tpu.memref_slice %arg2[%10, %c0_i32_4] : memref<32x128xf32, #tpu.memory_space<any>> -> memref<1x128xf32, #tpu.memory_space<any>>
    %12 = tpu.memref_squeeze %11 : memref<1x128xf32, #tpu.memory_space<any>> -> memref<128xf32, #tpu.memory_space<any>>
    %c0_i32_5 = arith.constant 0 : i32
    %13 = tpu.memref_slice %arg5[%c1_i32_3, %c0_i32_5] : memref<16x128xf32, #tpu.memory_space<vmem>> -> memref<1x128xf32, #tpu.memory_space<vmem>>
    %14 = tpu.memref_squeeze %13 : memref<1x128xf32, #tpu.memory_space<vmem>> -> memref<128xf32, #tpu.memory_space<vmem>>
    tpu.enqueue_dma source(%12 : memref<128xf32, #tpu.memory_space<any>>) target(%14 : memref<128xf32, #tpu.memory_space<vmem>>) target_semaphore(%arg6 : memref<!tpu.dma_semaphore, #tpu.memory_space<semaphore_mem>>)
    %c2_i32 = arith.constant 2 : i32
    %15 = arith.addi %0, %c2_i32 : i32
    %16 = arith.index_cast %15 : i32 to index
    %17 = memref.load %arg1[%16] : memref<16xi32, #tpu.memory_space<smem>>
    %c2_i32_6 = arith.constant 2 : i32
    %c0_i32_7 = arith.constant 0 : i32
    %18 = tpu.memref_slice %arg2[%17, %c0_i32_7] : memref<32x128xf32, #tpu.memory_space<any>> -> memref<1x128xf32, #tpu.memory_space<any>>
    %19 = tpu.memref_squeeze %18 : memref<1x128xf32, #tpu.memory_space<any>> -> memref<128xf32, #tpu.memory_space<any>>
    %c0_i32_8 = arith.constant 0 : i32
    %20 = tpu.memref_slice %arg5[%c2_i32_6, %c0_i32_8] : memref<16x128xf32, #tpu.memory_space<vmem>> -> memref<1x128xf32, #tpu.memory_space<vmem>>
    %21 = tpu.memref_squeeze %20 : memref<1x128xf32, #tpu.memory_space<vmem>> -> memref<128xf32, #tpu.memory_space<vmem>>
    tpu.enqueue_dma source(%19 : memref<128xf32, #tpu.memory_space<any>>) target(%21 : memref<128xf32, #tpu.memory_space<vmem>>) target_semaphore(%arg6 : memref<!tpu.dma_semaphore, #tpu.memory_space<semaphore_mem>>)
    %c3_i32 = arith.constant 3 : i32
    %22 = arith.addi %0, %c3_i32 : i32
    %23 = arith.index_cast %22 : i32 to index
    %24 = memref.load %arg1[%23] : memref<16xi32, #tpu.memory_space<smem>>
    %c3_i32_9 = arith.constant 3 : i32
    %c0_i32_10 = arith.constant 0 : i32
    %25 = tpu.memref_slice %arg2[%24, %c0_i32_10] : memref<32x128xf32, #tpu.memory_space<any>> -> memref<1x128xf32, #tpu.memory_space<any>>
    %26 = tpu.memref_squeeze %25 : memref<1x128xf32, #tpu.memory_space<any>> -> memref<128xf32, #tpu.memory_space<any>>
    %c0_i32_11 = arith.constant 0 : i32
    %27 = tpu.memref_slice %arg5[%c3_i32_9, %c0_i32_11] : memref<16x128xf32, #tpu.memory_space<vmem>> -> memref<1x128xf32, #tpu.memory_space<vmem>>
    %28 = tpu.memref_squeeze %27 : memref<1x128xf32, #tpu.memory_space<vmem>> -> memref<128xf32, #tpu.memory_space<vmem>>
    tpu.enqueue_dma source(%26 : memref<128xf32, #tpu.memory_space<any>>) target(%28 : memref<128xf32, #tpu.memory_space<vmem>>) target_semaphore(%arg6 : memref<!tpu.dma_semaphore, #tpu.memory_space<semaphore_mem>>)
    %c4_i32 = arith.constant 4 : i32
    %29 = arith.addi %0, %c4_i32 : i32
    %30 = arith.index_cast %29 : i32 to index
    %31 = memref.load %arg1[%30] : memref<16xi32, #tpu.memory_space<smem>>
    %c4_i32_12 = arith.constant 4 : i32
    %c0_i32_13 = arith.constant 0 : i32
    %32 = tpu.memref_slice %arg2[%31, %c0_i32_13] : memref<32x128xf32, #tpu.memory_space<any>> -> memref<1x128xf32, #tpu.memory_space<any>>
    %33 = tpu.memref_squeeze %32 : memref<1x128xf32, #tpu.memory_space<any>> -> memref<128xf32, #tpu.memory_space<any>>
    %c0_i32_14 = arith.constant 0 : i32
    %34 = tpu.memref_slice %arg5[%c4_i32_12, %c0_i32_14] : memref<16x128xf32, #tpu.memory_space<vmem>> -> memref<1x128xf32, #tpu.memory_space<vmem>>
    %35 = tpu.memref_squeeze %34 : memref<1x128xf32, #tpu.memory_space<vmem>> -> memref<128xf32, #tpu.memory_space<vmem>>
    tpu.enqueue_dma source(%33 : memref<128xf32, #tpu.memory_space<any>>) target(%35 : memref<128xf32, #tpu.memory_space<vmem>>) target_semaphore(%arg6 : memref<!tpu.dma_semaphore, #tpu.memory_space<semaphore_mem>>)
    %c5_i32 = arith.constant 5 : i32
    %36 = arith.addi %0, %c5_i32 : i32
    %37 = arith.index_cast %36 : i32 to index
    %38 = memref.load %arg1[%37] : memref<16xi32, #tpu.memory_space<smem>>
    %c5_i32_15 = arith.constant 5 : i32
    %c0_i32_16 = arith.constant 0 : i32
    %39 = tpu.memref_slice %arg2[%38, %c0_i32_16] : memref<32x128xf32, #tpu.memory_space<any>> -> memref<1x128xf32, #tpu.memory_space<any>>
    %40 = tpu.memref_squeeze %39 : memref<1x128xf32, #tpu.memory_space<any>> -> memref<128xf32, #tpu.memory_space<any>>
    %c0_i32_17 = arith.constant 0 : i32
    %41 = tpu.memref_slice %arg5[%c5_i32_15, %c0_i32_17] : memref<16x128xf32, #tpu.memory_space<vmem>> -> memref<1x128xf32, #tpu.memory_space<vmem>>
    %42 = tpu.memref_squeeze %41 : memref<1x128xf32, #tpu.memory_space<vmem>> -> memref<128xf32, #tpu.memory_space<vmem>>
    tpu.enqueue_dma source(%40 : memref<128xf32, #tpu.memory_space<any>>) target(%42 : memref<128xf32, #tpu.memory_space<vmem>>) target_semaphore(%arg6 : memref<!tpu.dma_semaphore, #tpu.memory_space<semaphore_mem>>)
    %c6_i32 = arith.constant 6 : i32
    %43 = arith.addi %0, %c6_i32 : i32
    %44 = arith.index_cast %43 : i32 to index
    %45 = memref.load %arg1[%44] : memref<16xi32, #tpu.memory_space<smem>>
    %c6_i32_18 = arith.constant 6 : i32
    %c0_i32_19 = arith.constant 0 : i32
    %46 = tpu.memref_slice %arg2[%45, %c0_i32_19] : memref<32x128xf32, #tpu.memory_space<any>> -> memref<1x128xf32, #tpu.memory_space<any>>
    %47 = tpu.memref_squeeze %46 : memref<1x128xf32, #tpu.memory_space<any>> -> memref<128xf32, #tpu.memory_space<any>>
    %c0_i32_20 = arith.constant 0 : i32
    %48 = tpu.memref_slice %arg5[%c6_i32_18, %c0_i32_20] : memref<16x128xf32, #tpu.memory_space<vmem>> -> memref<1x128xf32, #tpu.memory_space<vmem>>
    %49 = tpu.memref_squeeze %48 : memref<1x128xf32, #tpu.memory_space<vmem>> -> memref<128xf32, #tpu.memory_space<vmem>>
    tpu.enqueue_dma source(%47 : memref<128xf32, #tpu.memory_space<any>>) target(%49 : memref<128xf32, #tpu.memory_space<vmem>>) target_semaphore(%arg6 : memref<!tpu.dma_semaphore, #tpu.memory_space<semaphore_mem>>)
    %c7_i32 = arith.constant 7 : i32
    %50 = arith.addi %0, %c7_i32 : i32
    %51 = arith.index_cast %50 : i32 to index
    %52 = memref.load %arg1[%51] : memref<16xi32, #tpu.memory_space<smem>>
    %c7_i32_21 = arith.constant 7 : i32
    %c0_i32_22 = arith.constant 0 : i32
    %53 = tpu.memref_slice %arg2[%52, %c0_i32_22] : memref<32x128xf32, #tpu.memory_space<any>> -> memref<1x128xf32, #tpu.memory_space<any>>
    %54 = tpu.memref_squeeze %53 : memref<1x128xf32, #tpu.memory_space<any>> -> memref<128xf32, #tpu.memory_space<any>>
    %c0_i32_23 = arith.constant 0 : i32
    %55 = tpu.memref_slice %arg5[%c7_i32_21, %c0_i32_23] : memref<16x128xf32, #tpu.memory_space<vmem>> -> memref<1x128xf32, #tpu.memory_space<vmem>>
    %56 = tpu.memref_squeeze %55 : memref<1x128xf32, #tpu.memory_space<vmem>> -> memref<128xf32, #tpu.memory_space<vmem>>
    tpu.enqueue_dma source(%54 : memref<128xf32, #tpu.memory_space<any>>) target(%56 : memref<128xf32, #tpu.memory_space<vmem>>) target_semaphore(%arg6 : memref<!tpu.dma_semaphore, #tpu.memory_space<semaphore_mem>>)
    %c8_i32 = arith.constant 8 : i32
    %57 = arith.addi %0, %c8_i32 : i32
    %58 = arith.index_cast %57 : i32 to index
    %59 = memref.load %arg1[%58] : memref<16xi32, #tpu.memory_space<smem>>
    %c8_i32_24 = arith.constant 8 : i32
    %c0_i32_25 = arith.constant 0 : i32
    %60 = tpu.memref_slice %arg2[%59, %c0_i32_25] : memref<32x128xf32, #tpu.memory_space<any>> -> memref<1x128xf32, #tpu.memory_space<any>>
    %61 = tpu.memref_squeeze %60 : memref<1x128xf32, #tpu.memory_space<any>> -> memref<128xf32, #tpu.memory_space<any>>
    %c0_i32_26 = arith.constant 0 : i32
    %62 = tpu.memref_slice %arg5[%c8_i32_24, %c0_i32_26] : memref<16x128xf32, #tpu.memory_space<vmem>> -> memref<1x128xf32, #tpu.memory_space<vmem>>
    %63 = tpu.memref_squeeze %62 : memref<1x128xf32, #tpu.memory_space<vmem>> -> memref<128xf32, #tpu.memory_space<vmem>>
    tpu.enqueue_dma source(%61 : memref<128xf32, #tpu.memory_space<any>>) target(%63 : memref<128xf32, #tpu.memory_space<vmem>>) target_semaphore(%arg6 : memref<!tpu.dma_semaphore, #tpu.memory_space<semaphore_mem>>)
    %c9_i32 = arith.constant 9 : i32
    %64 = arith.addi %0, %c9_i32 : i32
    %65 = arith.index_cast %64 : i32 to index
    %66 = memref.load %arg1[%65] : memref<16xi32, #tpu.memory_space<smem>>
    %c9_i32_27 = arith.constant 9 : i32
    %c0_i32_28 = arith.constant 0 : i32
    %67 = tpu.memref_slice %arg2[%66, %c0_i32_28] : memref<32x128xf32, #tpu.memory_space<any>> -> memref<1x128xf32, #tpu.memory_space<any>>
    %68 = tpu.memref_squeeze %67 : memref<1x128xf32, #tpu.memory_space<any>> -> memref<128xf32, #tpu.memory_space<any>>
    %c0_i32_29 = arith.constant 0 : i32
    %69 = tpu.memref_slice %arg5[%c9_i32_27, %c0_i32_29] : memref<16x128xf32, #tpu.memory_space<vmem>> -> memref<1x128xf32, #tpu.memory_space<vmem>>
    %70 = tpu.memref_squeeze %69 : memref<1x128xf32, #tpu.memory_space<vmem>> -> memref<128xf32, #tpu.memory_space<vmem>>
    tpu.enqueue_dma source(%68 : memref<128xf32, #tpu.memory_space<any>>) target(%70 : memref<128xf32, #tpu.memory_space<vmem>>) target_semaphore(%arg6 : memref<!tpu.dma_semaphore, #tpu.memory_space<semaphore_mem>>)
    %c10_i32 = arith.constant 10 : i32
    %71 = arith.addi %0, %c10_i32 : i32
    %72 = arith.index_cast %71 : i32 to index
    %73 = memref.load %arg1[%72] : memref<16xi32, #tpu.memory_space<smem>>
    %c10_i32_30 = arith.constant 10 : i32
    %c0_i32_31 = arith.constant 0 : i32
    %74 = tpu.memref_slice %arg2[%73, %c0_i32_31] : memref<32x128xf32, #tpu.memory_space<any>> -> memref<1x128xf32, #tpu.memory_space<any>>
    %75 = tpu.memref_squeeze %74 : memref<1x128xf32, #tpu.memory_space<any>> -> memref<128xf32, #tpu.memory_space<any>>
    %c0_i32_32 = arith.constant 0 : i32
    %76 = tpu.memref_slice %arg5[%c10_i32_30, %c0_i32_32] : memref<16x128xf32, #tpu.memory_space<vmem>> -> memref<1x128xf32, #tpu.memory_space<vmem>>
    %77 = tpu.memref_squeeze %76 : memref<1x128xf32, #tpu.memory_space<vmem>> -> memref<128xf32, #tpu.memory_space<vmem>>
    tpu.enqueue_dma source(%75 : memref<128xf32, #tpu.memory_space<any>>) target(%77 : memref<128xf32, #tpu.memory_space<vmem>>) target_semaphore(%arg6 : memref<!tpu.dma_semaphore, #tpu.memory_space<semaphore_mem>>)
    %c11_i32 = arith.constant 11 : i32
    %78 = arith.addi %0, %c11_i32 : i32
    %79 = arith.index_cast %78 : i32 to index
    %80 = memref.load %arg1[%79] : memref<16xi32, #tpu.memory_space<smem>>
    %c11_i32_33 = arith.constant 11 : i32
    %c0_i32_34 = arith.constant 0 : i32
    %81 = tpu.memref_slice %arg2[%80, %c0_i32_34] : memref<32x128xf32, #tpu.memory_space<any>> -> memref<1x128xf32, #tpu.memory_space<any>>
    %82 = tpu.memref_squeeze %81 : memref<1x128xf32, #tpu.memory_space<any>> -> memref<128xf32, #tpu.memory_space<any>>
    %c0_i32_35 = arith.constant 0 : i32
    %83 = tpu.memref_slice %arg5[%c11_i32_33, %c0_i32_35] : memref<16x128xf32, #tpu.memory_space<vmem>> -> memref<1x128xf32, #tpu.memory_space<vmem>>
    %84 = tpu.memref_squeeze %83 : memref<1x128xf32, #tpu.memory_space<vmem>> -> memref<128xf32, #tpu.memory_space<vmem>>
    tpu.enqueue_dma source(%82 : memref<128xf32, #tpu.memory_space<any>>) target(%84 : memref<128xf32, #tpu.memory_space<vmem>>) target_semaphore(%arg6 : memref<!tpu.dma_semaphore, #tpu.memory_space<semaphore_mem>>)
    %c12_i32 = arith.constant 12 : i32
    %85 = arith.addi %0, %c12_i32 : i32
    %86 = arith.index_cast %85 : i32 to index
    %87 = memref.load %arg1[%86] : memref<16xi32, #tpu.memory_space<smem>>
    %c12_i32_36 = arith.constant 12 : i32
    %c0_i32_37 = arith.constant 0 : i32
    %88 = tpu.memref_slice %arg2[%87, %c0_i32_37] : memref<32x128xf32, #tpu.memory_space<any>> -> memref<1x128xf32, #tpu.memory_space<any>>
    %89 = tpu.memref_squeeze %88 : memref<1x128xf32, #tpu.memory_space<any>> -> memref<128xf32, #tpu.memory_space<any>>
    %c0_i32_38 = arith.constant 0 : i32
    %90 = tpu.memref_slice %arg5[%c12_i32_36, %c0_i32_38] : memref<16x128xf32, #tpu.memory_space<vmem>> -> memref<1x128xf32, #tpu.memory_space<vmem>>
    %91 = tpu.memref_squeeze %90 : memref<1x128xf32, #tpu.memory_space<vmem>> -> memref<128xf32, #tpu.memory_space<vmem>>
    tpu.enqueue_dma source(%89 : memref<128xf32, #tpu.memory_space<any>>) target(%91 : memref<128xf32, #tpu.memory_space<vmem>>) target_semaphore(%arg6 : memref<!tpu.dma_semaphore, #tpu.memory_space<semaphore_mem>>)
    %c13_i32 = arith.constant 13 : i32
    %92 = arith.addi %0, %c13_i32 : i32
    %93 = arith.index_cast %92 : i32 to index
    %94 = memref.load %arg1[%93] : memref<16xi32, #tpu.memory_space<smem>>
    %c13_i32_39 = arith.constant 13 : i32
    %c0_i32_40 = arith.constant 0 : i32
    %95 = tpu.memref_slice %arg2[%94, %c0_i32_40] : memref<32x128xf32, #tpu.memory_space<any>> -> memref<1x128xf32, #tpu.memory_space<any>>
    %96 = tpu.memref_squeeze %95 : memref<1x128xf32, #tpu.memory_space<any>> -> memref<128xf32, #tpu.memory_space<any>>
    %c0_i32_41 = arith.constant 0 : i32
    %97 = tpu.memref_slice %arg5[%c13_i32_39, %c0_i32_41] : memref<16x128xf32, #tpu.memory_space<vmem>> -> memref<1x128xf32, #tpu.memory_space<vmem>>
    %98 = tpu.memref_squeeze %97 : memref<1x128xf32, #tpu.memory_space<vmem>> -> memref<128xf32, #tpu.memory_space<vmem>>
    tpu.enqueue_dma source(%96 : memref<128xf32, #tpu.memory_space<any>>) target(%98 : memref<128xf32, #tpu.memory_space<vmem>>) target_semaphore(%arg6 : memref<!tpu.dma_semaphore, #tpu.memory_space<semaphore_mem>>)
    %c14_i32 = arith.constant 14 : i32
    %99 = arith.addi %0, %c14_i32 : i32
    %100 = arith.index_cast %99 : i32 to index
    %101 = memref.load %arg1[%100] : memref<16xi32, #tpu.memory_space<smem>>
    %c14_i32_42 = arith.constant 14 : i32
    %c0_i32_43 = arith.constant 0 : i32
    %102 = tpu.memref_slice %arg2[%101, %c0_i32_43] : memref<32x128xf32, #tpu.memory_space<any>> -> memref<1x128xf32, #tpu.memory_space<any>>
    %103 = tpu.memref_squeeze %102 : memref<1x128xf32, #tpu.memory_space<any>> -> memref<128xf32, #tpu.memory_space<any>>
    %c0_i32_44 = arith.constant 0 : i32
    %104 = tpu.memref_slice %arg5[%c14_i32_42, %c0_i32_44] : memref<16x128xf32, #tpu.memory_space<vmem>> -> memref<1x128xf32, #tpu.memory_space<vmem>>
    %105 = tpu.memref_squeeze %104 : memref<1x128xf32, #tpu.memory_space<vmem>> -> memref<128xf32, #tpu.memory_space<vmem>>
    tpu.enqueue_dma source(%103 : memref<128xf32, #tpu.memory_space<any>>) target(%105 : memref<128xf32, #tpu.memory_space<vmem>>) target_semaphore(%arg6 : memref<!tpu.dma_semaphore, #tpu.memory_space<semaphore_mem>>)
    %c15_i32 = arith.constant 15 : i32
    %106 = arith.addi %0, %c15_i32 : i32
    %107 = arith.index_cast %106 : i32 to index
    %108 = memref.load %arg1[%107] : memref<16xi32, #tpu.memory_space<smem>>
    %c15_i32_45 = arith.constant 15 : i32
    %c0_i32_46 = arith.constant 0 : i32
    %109 = tpu.memref_slice %arg2[%108, %c0_i32_46] : memref<32x128xf32, #tpu.memory_space<any>> -> memref<1x128xf32, #tpu.memory_space<any>>
    %110 = tpu.memref_squeeze %109 : memref<1x128xf32, #tpu.memory_space<any>> -> memref<128xf32, #tpu.memory_space<any>>
    %c0_i32_47 = arith.constant 0 : i32
    %111 = tpu.memref_slice %arg5[%c15_i32_45, %c0_i32_47] : memref<16x128xf32, #tpu.memory_space<vmem>> -> memref<1x128xf32, #tpu.memory_space<vmem>>
    %112 = tpu.memref_squeeze %111 : memref<1x128xf32, #tpu.memory_space<vmem>> -> memref<128xf32, #tpu.memory_space<vmem>>
    tpu.enqueue_dma source(%110 : memref<128xf32, #tpu.memory_space<any>>) target(%112 : memref<128xf32, #tpu.memory_space<vmem>>) target_semaphore(%arg6 : memref<!tpu.dma_semaphore, #tpu.memory_space<semaphore_mem>>)
    %c0_i32_48 = arith.constant 0 : i32
    %c0_i32_49 = arith.constant 0 : i32
    %c0_i32_50 = arith.constant 0 : i32
    %113 = tpu.memref_slice %arg2[%c0_i32_48, %c0_i32_50] : memref<32x128xf32, #tpu.memory_space<any>> -> memref<1x128xf32, #tpu.memory_space<any>>
    %114 = tpu.memref_squeeze %113 : memref<1x128xf32, #tpu.memory_space<any>> -> memref<128xf32, #tpu.memory_space<any>>
    %c0_i32_51 = arith.constant 0 : i32
    %115 = tpu.memref_slice %arg5[%c0_i32_49, %c0_i32_51] : memref<16x128xf32, #tpu.memory_space<vmem>> -> memref<1x128xf32, #tpu.memory_space<vmem>>
    %116 = tpu.memref_squeeze %115 : memref<1x128xf32, #tpu.memory_space<vmem>> -> memref<128xf32, #tpu.memory_space<vmem>>
    tpu.wait_dma2 semaphore(%arg6 : memref<!tpu.dma_semaphore, #tpu.memory_space<semaphore_mem>>) src(%114 : memref<128xf32, #tpu.memory_space<any>>) dst(%116 : memref<128xf32, #tpu.memory_space<vmem>>)
    %c0_i32_52 = arith.constant 0 : i32
    %c1_i32_53 = arith.constant 1 : i32
    %c0_i32_54 = arith.constant 0 : i32
    %117 = tpu.memref_slice %arg2[%c0_i32_52, %c0_i32_54] : memref<32x128xf32, #tpu.memory_space<any>> -> memref<1x128xf32, #tpu.memory_space<any>>
    %118 = tpu.memref_squeeze %117 : memref<1x128xf32, #tpu.memory_space<any>> -> memref<128xf32, #tpu.memory_space<any>>
    %c0_i32_55 = arith.constant 0 : i32
    %119 = tpu.memref_slice %arg5[%c1_i32_53, %c0_i32_55] : memref<16x128xf32, #tpu.memory_space<vmem>> -> memref<1x128xf32, #tpu.memory_space<vmem>>
    %120 = tpu.memref_squeeze %119 : memref<1x128xf32, #tpu.memory_space<vmem>> -> memref<128xf32, #tpu.memory_space<vmem>>
    tpu.wait_dma2 semaphore(%arg6 : memref<!tpu.dma_semaphore, #tpu.memory_space<semaphore_mem>>) src(%118 : memref<128xf32, #tpu.memory_space<any>>) dst(%120 : memref<128xf32, #tpu.memory_space<vmem>>)
    %c0_i32_56 = arith.constant 0 : i32
    %c2_i32_57 = arith.constant 2 : i32
    %c0_i32_58 = arith.constant 0 : i32
    %121 = tpu.memref_slice %arg2[%c0_i32_56, %c0_i32_58] : memref<32x128xf32, #tpu.memory_space<any>> -> memref<1x128xf32, #tpu.memory_space<any>>
    %122 = tpu.memref_squeeze %121 : memref<1x128xf32, #tpu.memory_space<any>> -> memref<128xf32, #tpu.memory_space<any>>
    %c0_i32_59 = arith.constant 0 : i32
    %123 = tpu.memref_slice %arg5[%c2_i32_57, %c0_i32_59] : memref<16x128xf32, #tpu.memory_space<vmem>> -> memref<1x128xf32, #tpu.memory_space<vmem>>
    %124 = tpu.memref_squeeze %123 : memref<1x128xf32, #tpu.memory_space<vmem>> -> memref<128xf32, #tpu.memory_space<vmem>>
    tpu.wait_dma2 semaphore(%arg6 : memref<!tpu.dma_semaphore, #tpu.memory_space<semaphore_mem>>) src(%122 : memref<128xf32, #tpu.memory_space<any>>) dst(%124 : memref<128xf32, #tpu.memory_space<vmem>>)
    %c0_i32_60 = arith.constant 0 : i32
    %c3_i32_61 = arith.constant 3 : i32
    %c0_i32_62 = arith.constant 0 : i32
    %125 = tpu.memref_slice %arg2[%c0_i32_60, %c0_i32_62] : memref<32x128xf32, #tpu.memory_space<any>> -> memref<1x128xf32, #tpu.memory_space<any>>
    %126 = tpu.memref_squeeze %125 : memref<1x128xf32, #tpu.memory_space<any>> -> memref<128xf32, #tpu.memory_space<any>>
    %c0_i32_63 = arith.constant 0 : i32
    %127 = tpu.memref_slice %arg5[%c3_i32_61, %c0_i32_63] : memref<16x128xf32, #tpu.memory_space<vmem>> -> memref<1x128xf32, #tpu.memory_space<vmem>>
    %128 = tpu.memref_squeeze %127 : memref<1x128xf32, #tpu.memory_space<vmem>> -> memref<128xf32, #tpu.memory_space<vmem>>
    tpu.wait_dma2 semaphore(%arg6 : memref<!tpu.dma_semaphore, #tpu.memory_space<semaphore_mem>>) src(%126 : memref<128xf32, #tpu.memory_space<any>>) dst(%128 : memref<128xf32, #tpu.memory_space<vmem>>)
    %c0_i32_64 = arith.constant 0 : i32
    %c4_i32_65 = arith.constant 4 : i32
    %c0_i32_66 = arith.constant 0 : i32
    %129 = tpu.memref_slice %arg2[%c0_i32_64, %c0_i32_66] : memref<32x128xf32, #tpu.memory_space<any>> -> memref<1x128xf32, #tpu.memory_space<any>>
    %130 = tpu.memref_squeeze %129 : memref<1x128xf32, #tpu.memory_space<any>> -> memref<128xf32, #tpu.memory_space<any>>
    %c0_i32_67 = arith.constant 0 : i32
    %131 = tpu.memref_slice %arg5[%c4_i32_65, %c0_i32_67] : memref<16x128xf32, #tpu.memory_space<vmem>> -> memref<1x128xf32, #tpu.memory_space<vmem>>
    %132 = tpu.memref_squeeze %131 : memref<1x128xf32, #tpu.memory_space<vmem>> -> memref<128xf32, #tpu.memory_space<vmem>>
    tpu.wait_dma2 semaphore(%arg6 : memref<!tpu.dma_semaphore, #tpu.memory_space<semaphore_mem>>) src(%130 : memref<128xf32, #tpu.memory_space<any>>) dst(%132 : memref<128xf32, #tpu.memory_space<vmem>>)
    %c0_i32_68 = arith.constant 0 : i32
    %c5_i32_69 = arith.constant 5 : i32
    %c0_i32_70 = arith.constant 0 : i32
    %133 = tpu.memref_slice %arg2[%c0_i32_68, %c0_i32_70] : memref<32x128xf32, #tpu.memory_space<any>> -> memref<1x128xf32, #tpu.memory_space<any>>
    %134 = tpu.memref_squeeze %133 : memref<1x128xf32, #tpu.memory_space<any>> -> memref<128xf32, #tpu.memory_space<any>>
    %c0_i32_71 = arith.constant 0 : i32
    %135 = tpu.memref_slice %arg5[%c5_i32_69, %c0_i32_71] : memref<16x128xf32, #tpu.memory_space<vmem>> -> memref<1x128xf32, #tpu.memory_space<vmem>>
    %136 = tpu.memref_squeeze %135 : memref<1x128xf32, #tpu.memory_space<vmem>> -> memref<128xf32, #tpu.memory_space<vmem>>
    tpu.wait_dma2 semaphore(%arg6 : memref<!tpu.dma_semaphore, #tpu.memory_space<semaphore_mem>>) src(%134 : memref<128xf32, #tpu.memory_space<any>>) dst(%136 : memref<128xf32, #tpu.memory_space<vmem>>)
    %c0_i32_72 = arith.constant 0 : i32
    %c6_i32_73 = arith.constant 6 : i32
    %c0_i32_74 = arith.constant 0 : i32
    %137 = tpu.memref_slice %arg2[%c0_i32_72, %c0_i32_74] : memref<32x128xf32, #tpu.memory_space<any>> -> memref<1x128xf32, #tpu.memory_space<any>>
    %138 = tpu.memref_squeeze %137 : memref<1x128xf32, #tpu.memory_space<any>> -> memref<128xf32, #tpu.memory_space<any>>
    %c0_i32_75 = arith.constant 0 : i32
    %139 = tpu.memref_slice %arg5[%c6_i32_73, %c0_i32_75] : memref<16x128xf32, #tpu.memory_space<vmem>> -> memref<1x128xf32, #tpu.memory_space<vmem>>
    %140 = tpu.memref_squeeze %139 : memref<1x128xf32, #tpu.memory_space<vmem>> -> memref<128xf32, #tpu.memory_space<vmem>>
    tpu.wait_dma2 semaphore(%arg6 : memref<!tpu.dma_semaphore, #tpu.memory_space<semaphore_mem>>) src(%138 : memref<128xf32, #tpu.memory_space<any>>) dst(%140 : memref<128xf32, #tpu.memory_space<vmem>>)
    %c0_i32_76 = arith.constant 0 : i32
    %c7_i32_77 = arith.constant 7 : i32
    %c0_i32_78 = arith.constant 0 : i32
    %141 = tpu.memref_slice %arg2[%c0_i32_76, %c0_i32_78] : memref<32x128xf32, #tpu.memory_space<any>> -> memref<1x128xf32, #tpu.memory_space<any>>
    %142 = tpu.memref_squeeze %141 : memref<1x128xf32, #tpu.memory_space<any>> -> memref<128xf32, #tpu.memory_space<any>>
    %c0_i32_79 = arith.constant 0 : i32
    %143 = tpu.memref_slice %arg5[%c7_i32_77, %c0_i32_79] : memref<16x128xf32, #tpu.memory_space<vmem>> -> memref<1x128xf32, #tpu.memory_space<vmem>>
    %144 = tpu.memref_squeeze %143 : memref<1x128xf32, #tpu.memory_space<vmem>> -> memref<128xf32, #tpu.memory_space<vmem>>
    tpu.wait_dma2 semaphore(%arg6 : memref<!tpu.dma_semaphore, #tpu.memory_space<semaphore_mem>>) src(%142 : memref<128xf32, #tpu.memory_space<any>>) dst(%144 : memref<128xf32, #tpu.memory_space<vmem>>)
    %c0_i32_80 = arith.constant 0 : i32
    %c8_i32_81 = arith.constant 8 : i32
    %c0_i32_82 = arith.constant 0 : i32
    %145 = tpu.memref_slice %arg2[%c0_i32_80, %c0_i32_82] : memref<32x128xf32, #tpu.memory_space<any>> -> memref<1x128xf32, #tpu.memory_space<any>>
    %146 = tpu.memref_squeeze %145 : memref<1x128xf32, #tpu.memory_space<any>> -> memref<128xf32, #tpu.memory_space<any>>
    %c0_i32_83 = arith.constant 0 : i32
    %147 = tpu.memref_slice %arg5[%c8_i32_81, %c0_i32_83] : memref<16x128xf32, #tpu.memory_space<vmem>> -> memref<1x128xf32, #tpu.memory_space<vmem>>
    %148 = tpu.memref_squeeze %147 : memref<1x128xf32, #tpu.memory_space<vmem>> -> memref<128xf32, #tpu.memory_space<vmem>>
    tpu.wait_dma2 semaphore(%arg6 : memref<!tpu.dma_semaphore, #tpu.memory_space<semaphore_mem>>) src(%146 : memref<128xf32, #tpu.memory_space<any>>) dst(%148 : memref<128xf32, #tpu.memory_space<vmem>>)
    %c0_i32_84 = arith.constant 0 : i32
    %c9_i32_85 = arith.constant 9 : i32
    %c0_i32_86 = arith.constant 0 : i32
    %149 = tpu.memref_slice %arg2[%c0_i32_84, %c0_i32_86] : memref<32x128xf32, #tpu.memory_space<any>> -> memref<1x128xf32, #tpu.memory_space<any>>
    %150 = tpu.memref_squeeze %149 : memref<1x128xf32, #tpu.memory_space<any>> -> memref<128xf32, #tpu.memory_space<any>>
    %c0_i32_87 = arith.constant 0 : i32
    %151 = tpu.memref_slice %arg5[%c9_i32_85, %c0_i32_87] : memref<16x128xf32, #tpu.memory_space<vmem>> -> memref<1x128xf32, #tpu.memory_space<vmem>>
    %152 = tpu.memref_squeeze %151 : memref<1x128xf32, #tpu.memory_space<vmem>> -> memref<128xf32, #tpu.memory_space<vmem>>
    tpu.wait_dma2 semaphore(%arg6 : memref<!tpu.dma_semaphore, #tpu.memory_space<semaphore_mem>>) src(%150 : memref<128xf32, #tpu.memory_space<any>>) dst(%152 : memref<128xf32, #tpu.memory_space<vmem>>)
    %c0_i32_88 = arith.constant 0 : i32
    %c10_i32_89 = arith.constant 10 : i32
    %c0_i32_90 = arith.constant 0 : i32
    %153 = tpu.memref_slice %arg2[%c0_i32_88, %c0_i32_90] : memref<32x128xf32, #tpu.memory_space<any>> -> memref<1x128xf32, #tpu.memory_space<any>>
    %154 = tpu.memref_squeeze %153 : memref<1x128xf32, #tpu.memory_space<any>> -> memref<128xf32, #tpu.memory_space<any>>
    %c0_i32_91 = arith.constant 0 : i32
    %155 = tpu.memref_slice %arg5[%c10_i32_89, %c0_i32_91] : memref<16x128xf32, #tpu.memory_space<vmem>> -> memref<1x128xf32, #tpu.memory_space<vmem>>
    %156 = tpu.memref_squeeze %155 : memref<1x128xf32, #tpu.memory_space<vmem>> -> memref<128xf32, #tpu.memory_space<vmem>>
    tpu.wait_dma2 semaphore(%arg6 : memref<!tpu.dma_semaphore, #tpu.memory_space<semaphore_mem>>) src(%154 : memref<128xf32, #tpu.memory_space<any>>) dst(%156 : memref<128xf32, #tpu.memory_space<vmem>>)
    %c0_i32_92 = arith.constant 0 : i32
    %c11_i32_93 = arith.constant 11 : i32
    %c0_i32_94 = arith.constant 0 : i32
    %157 = tpu.memref_slice %arg2[%c0_i32_92, %c0_i32_94] : memref<32x128xf32, #tpu.memory_space<any>> -> memref<1x128xf32, #tpu.memory_space<any>>
    %158 = tpu.memref_squeeze %157 : memref<1x128xf32, #tpu.memory_space<any>> -> memref<128xf32, #tpu.memory_space<any>>
    %c0_i32_95 = arith.constant 0 : i32
    %159 = tpu.memref_slice %arg5[%c11_i32_93, %c0_i32_95] : memref<16x128xf32, #tpu.memory_space<vmem>> -> memref<1x128xf32, #tpu.memory_space<vmem>>
    %160 = tpu.memref_squeeze %159 : memref<1x128xf32, #tpu.memory_space<vmem>> -> memref<128xf32, #tpu.memory_space<vmem>>
    tpu.wait_dma2 semaphore(%arg6 : memref<!tpu.dma_semaphore, #tpu.memory_space<semaphore_mem>>) src(%158 : memref<128xf32, #tpu.memory_space<any>>) dst(%160 : memref<128xf32, #tpu.memory_space<vmem>>)
    %c0_i32_96 = arith.constant 0 : i32
    %c12_i32_97 = arith.constant 12 : i32
    %c0_i32_98 = arith.constant 0 : i32
    %161 = tpu.memref_slice %arg2[%c0_i32_96, %c0_i32_98] : memref<32x128xf32, #tpu.memory_space<any>> -> memref<1x128xf32, #tpu.memory_space<any>>
    %162 = tpu.memref_squeeze %161 : memref<1x128xf32, #tpu.memory_space<any>> -> memref<128xf32, #tpu.memory_space<any>>
    %c0_i32_99 = arith.constant 0 : i32
    %163 = tpu.memref_slice %arg5[%c12_i32_97, %c0_i32_99] : memref<16x128xf32, #tpu.memory_space<vmem>> -> memref<1x128xf32, #tpu.memory_space<vmem>>
    %164 = tpu.memref_squeeze %163 : memref<1x128xf32, #tpu.memory_space<vmem>> -> memref<128xf32, #tpu.memory_space<vmem>>
    tpu.wait_dma2 semaphore(%arg6 : memref<!tpu.dma_semaphore, #tpu.memory_space<semaphore_mem>>) src(%162 : memref<128xf32, #tpu.memory_space<any>>) dst(%164 : memref<128xf32, #tpu.memory_space<vmem>>)
    %c0_i32_100 = arith.constant 0 : i32
    %c13_i32_101 = arith.constant 13 : i32
    %c0_i32_102 = arith.constant 0 : i32
    %165 = tpu.memref_slice %arg2[%c0_i32_100, %c0_i32_102] : memref<32x128xf32, #tpu.memory_space<any>> -> memref<1x128xf32, #tpu.memory_space<any>>
    %166 = tpu.memref_squeeze %165 : memref<1x128xf32, #tpu.memory_space<any>> -> memref<128xf32, #tpu.memory_space<any>>
    %c0_i32_103 = arith.constant 0 : i32
    %167 = tpu.memref_slice %arg5[%c13_i32_101, %c0_i32_103] : memref<16x128xf32, #tpu.memory_space<vmem>> -> memref<1x128xf32, #tpu.memory_space<vmem>>
    %168 = tpu.memref_squeeze %167 : memref<1x128xf32, #tpu.memory_space<vmem>> -> memref<128xf32, #tpu.memory_space<vmem>>
    tpu.wait_dma2 semaphore(%arg6 : memref<!tpu.dma_semaphore, #tpu.memory_space<semaphore_mem>>) src(%166 : memref<128xf32, #tpu.memory_space<any>>) dst(%168 : memref<128xf32, #tpu.memory_space<vmem>>)
    %c0_i32_104 = arith.constant 0 : i32
    %c14_i32_105 = arith.constant 14 : i32
    %c0_i32_106 = arith.constant 0 : i32
    %169 = tpu.memref_slice %arg2[%c0_i32_104, %c0_i32_106] : memref<32x128xf32, #tpu.memory_space<any>> -> memref<1x128xf32, #tpu.memory_space<any>>
    %170 = tpu.memref_squeeze %169 : memref<1x128xf32, #tpu.memory_space<any>> -> memref<128xf32, #tpu.memory_space<any>>
    %c0_i32_107 = arith.constant 0 : i32
    %171 = tpu.memref_slice %arg5[%c14_i32_105, %c0_i32_107] : memref<16x128xf32, #tpu.memory_space<vmem>> -> memref<1x128xf32, #tpu.memory_space<vmem>>
    %172 = tpu.memref_squeeze %171 : memref<1x128xf32, #tpu.memory_space<vmem>> -> memref<128xf32, #tpu.memory_space<vmem>>
    tpu.wait_dma2 semaphore(%arg6 : memref<!tpu.dma_semaphore, #tpu.memory_space<semaphore_mem>>) src(%170 : memref<128xf32, #tpu.memory_space<any>>) dst(%172 : memref<128xf32, #tpu.memory_space<vmem>>)
    %c0_i32_108 = arith.constant 0 : i32
    %c15_i32_109 = arith.constant 15 : i32
    %c0_i32_110 = arith.constant 0 : i32
    %173 = tpu.memref_slice %arg2[%c0_i32_108, %c0_i32_110] : memref<32x128xf32, #tpu.memory_space<any>> -> memref<1x128xf32, #tpu.memory_space<any>>
    %174 = tpu.memref_squeeze %173 : memref<1x128xf32, #tpu.memory_space<any>> -> memref<128xf32, #tpu.memory_space<any>>
    %c0_i32_111 = arith.constant 0 : i32
    %175 = tpu.memref_slice %arg5[%c15_i32_109, %c0_i32_111] : memref<16x128xf32, #tpu.memory_space<vmem>> -> memref<1x128xf32, #tpu.memory_space<vmem>>
    %176 = tpu.memref_squeeze %175 : memref<1x128xf32, #tpu.memory_space<vmem>> -> memref<128xf32, #tpu.memory_space<vmem>>
    tpu.wait_dma2 semaphore(%arg6 : memref<!tpu.dma_semaphore, #tpu.memory_space<semaphore_mem>>) src(%174 : memref<128xf32, #tpu.memory_space<any>>) dst(%176 : memref<128xf32, #tpu.memory_space<vmem>>)
    %c0 = arith.constant 0 : index
    %c0_112 = arith.constant 0 : index
    %177 = vector.load %arg5[%c0, %c0_112] : memref<16x128xf32, #tpu.memory_space<vmem>>, vector<16x128xf32>
    %c0_113 = arith.constant 0 : index
    %c0_114 = arith.constant 0 : index
    %178 = vector.load %arg3[%c0_113, %c0_114] : memref<128x128xf32, #tpu.memory_space<vmem>>, vector<128x128xf32>
    %cst = arith.constant dense<0.000000e+00> : vector<16x128xf32>
    %179 = tpu.matmul %177, %178, %cst {dimension_numbers = #tpu.dot_dimension_numbers<[1], [0], [0], [1], [0, 0, 1, 1], [], []>} : vector<16x128xf32>, vector<128x128xf32>, vector<16x128xf32> -> vector<16x128xf32>
    %c0_115 = arith.constant 0 : index
    %c0_116 = arith.constant 0 : index
    %180 = vector.load %arg4[%c0_115, %c0_116] : memref<16x128xf32, #tpu.memory_space<vmem>>, vector<16x128xf32>
    tpu.vector_store %arg4[%c0_115, %c0_116], %179 {strides = array<i32>} : memref<16x128xf32, #tpu.memory_space<vmem>>, vector<16x128xf32>,
    return
  }
  func.func @transform_1(%arg0: i32, %arg1: memref<16xi32, #tpu.memory_space<smem>>) -> (i32, i32) {
    %c0_i32 = arith.constant 0 : i32
    %c0_i32_0 = arith.constant 0 : i32
    %c0_i32_1 = arith.constant 0 : i32
    return %c0_i32, %c0_i32_0 : i32, i32
  }
  func.func @transform_2(%arg0: i32, %arg1: memref<16xi32, #tpu.memory_space<smem>>) -> (i32, i32) {
    %c0_i32 = arith.constant 0 : i32
    %c0_i32_0 = arith.constant 0 : i32
    return %arg0, %c0_i32 : i32, i32
  }
}

</mosaic_0001>

<llo_original>
// kernel: tpu_custom_call.1
$region0: #{tpu_custom_call.1}
  #allocation0 [shape = 'u32[]', space=smem, size = 0x4, offset = 0x4, fixed_abs, tag = 'smem constant byte address 0x4 - core index']
  #allocation1 [shape = 'u32[72,128]{1,0:T(1,128)}', space=vmem, size = 0x9000, scoped, tag = 'internal scratch']
  #allocation2 [shape = 'f32[16,128]{1,0:T(8,128)}', space=vmem, size = 0x2000, scoped, tag = 'scratch operand']
  #allocation3 [shape = 's32[1]{0}', space=sflag, size = 0x4, scoped, tag = 'scratch operand']
  #allocation4 [shape = 's32[1]{0}', space=sflag, size = 0x4, scoped, tag = 'scoped memory for tpu_custom_call.1']
  #allocation5 [shape = 'u8[512]{0}', space=smem, size = 0x200, scoped, tag = 'prefetched SMEM operand 0']
  #allocation10 [shape = 's32[]', space=sflag, size = 0x4, offset = 0, fixed_abs, tag = 'sflag constant byte address 0x0 - dummy sync flag']
  #allocation11 [shape = 's32[]', space=sflag, size = 0x4, offset = 0, fixed_abs, tag = 'sflag constant byte address 0x0 - dummy sync flag']
  #allocation12 [shape = 'u32[]', space=smem, size = 0x4, offset = 0x44, fixed_abs, tag = 'smem constant byte address 0x44 - assertion arg 0']
  #allocation13 [shape = 'u32[]', space=smem, size = 0x4, offset = 0x48, fixed_abs, tag = 'smem constant byte address 0x48 - assertion arg 1']
  #allocation14 [shape = 's32[]', space=sflag, size = 0x4, offset = 0, fixed_abs, tag = 'sflag constant byte address 0x0 - dummy sync flag']
  #allocation15 [shape = 's32[]', space=sflag, size = 0x4, offset = 0, fixed_abs, tag = 'sflag constant byte address 0x0 - dummy sync flag']
  #allocation16 [shape = 's32[]', space=sflag, size = 0x4, offset = 0, fixed_abs, tag = 'sflag constant byte address 0x0 - dummy sync flag']
  #allocation17 [shape = 's32[]', space=sflag, size = 0x4, offset = 0, fixed_abs, tag = 'sflag constant byte address 0x0 - dummy sync flag']
  #allocation18 [shape = 's32[]', space=sflag, size = 0x4, offset = 0, fixed_abs, tag = 'sflag constant byte address 0x0 - dummy sync flag']
  #allocation19 [shape = 's32[]', space=sflag, size = 0x4, offset = 0, fixed_abs, tag = 'sflag constant byte address 0x0 - dummy sync flag']
  #allocation20 [shape = 's32[]', space=sflag, size = 0x4, offset = 0, fixed_abs, tag = 'sflag constant byte address 0x0 - dummy sync flag']
  #allocation21 [shape = 's32[]', space=sflag, size = 0x4, offset = 0, fixed_abs, tag = 'sflag constant byte address 0x0 - dummy sync flag']
  #allocation22 [shape = 's32[]', space=sflag, size = 0x4, offset = 0, fixed_abs, tag = 'sflag constant byte address 0x0 - dummy sync flag']
  #allocation23 [shape = 's32[]', space=sflag, size = 0x4, offset = 0, fixed_abs, tag = 'sflag constant byte address 0x0 - dummy sync flag']
  #allocation24 [shape = 's32[]', space=sflag, size = 0x4, offset = 0, fixed_abs, tag = 'sflag constant byte address 0x0 - dummy sync flag']
  #allocation25 [shape = 's32[]', space=sflag, size = 0x4, offset = 0, fixed_abs, tag = 'sflag constant byte address 0x0 - dummy sync flag']
  #allocation26 [shape = 's32[]', space=sflag, size = 0x4, offset = 0, fixed_abs, tag = 'sflag constant byte address 0x0 - dummy sync flag']
  #allocation27 [shape = 's32[]', space=sflag, size = 0x4, offset = 0, fixed_abs, tag = 'sflag constant byte address 0x0 - dummy sync flag']
  #allocation28 [shape = 's32[]', space=sflag, size = 0x4, offset = 0, fixed_abs, tag = 'sflag constant byte address 0x0 - dummy sync flag']
  #allocation29 [shape = 's32[]', space=sflag, size = 0x4, offset = 0, fixed_abs, tag = 'sflag constant byte address 0x0 - dummy sync flag']
  #allocation30 [shape = 's32[]', space=sflag, size = 0x4, offset = 0, fixed_abs, tag = 'sflag constant byte address 0x0 - dummy sync flag']
  #allocation31 [shape = 's32[]', space=sflag, size = 0x4, offset = 0, fixed_abs, tag = 'sflag constant byte address 0x0 - dummy sync flag']
  #allocation32 [shape = 's32[]', space=sflag, size = 0x4, offset = 0, fixed_abs, tag = 'sflag constant byte address 0x0 - dummy sync flag']
  #allocation33 [shape = 's32[]', space=sflag, size = 0x4, offset = 0, fixed_abs, tag = 'sflag constant byte address 0x0 - dummy sync flag']
  #allocation34 [shape = 's32[]', space=sflag, size = 0x4, offset = 0, fixed_abs, tag = 'sflag constant byte address 0x0 - dummy sync flag']
  #allocation35 [shape = 's32[]', space=sflag, size = 0x4, offset = 0, fixed_abs, tag = 'sflag constant byte address 0x0 - dummy sync flag']
  #allocation36 [shape = 's32[]', space=sflag, size = 0x4, offset = 0, fixed_abs, tag = 'sflag constant byte address 0x0 - dummy sync flag']
  #allocation37 [shape = 's32[]', space=sflag, size = 0x4, offset = 0, fixed_abs, tag = 'sflag constant byte address 0x0 - dummy sync flag']
  #allocation38 [shape = 's32[]', space=sflag, size = 0x4, offset = 0, fixed_abs, tag = 'sflag constant byte address 0x0 - dummy sync flag']
  #allocation39 [shape = 's32[]', space=sflag, size = 0x4, offset = 0, fixed_abs, tag = 'sflag constant byte address 0x0 - dummy sync flag']
  #allocation40 [shape = 's32[]', space=sflag, size = 0x4, offset = 0, fixed_abs, tag = 'sflag constant byte address 0x0 - dummy sync flag']
  #allocation41 [shape = 's32[]', space=sflag, size = 0x4, offset = 0, fixed_abs, tag = 'sflag constant byte address 0x0 - dummy sync flag']
  #allocation42 [shape = 's32[]', space=sflag, size = 0x4, offset = 0, fixed_abs, tag = 'sflag constant byte address 0x0 - dummy sync flag']
  #allocation43 [shape = 's32[]', space=sflag, size = 0x4, offset = 0, fixed_abs, tag = 'sflag constant byte address 0x0 - dummy sync flag']
  %s0 = inlined_call_operand.hbm [shape: s32[16], index: 0, kind: input, shape index: {}]
  %s1 = inlined_call_operand.hbm [shape: f32[32,128], index: 1, kind: input, shape index: {}]
  %s2 = inlined_call_operand.hbm [shape: f32[128,128], index: 2, kind: input, shape index: {}]
  %s3 = inlined_call_operand.hbm [shape: f32[16,128], index: 3, kind: output, shape index: {}]
  %s4 = sld [smem:[#allocation0]]
  $region82: #{tpu_custom_call.1} parent=0
    _
  %s6 = ssub.s32 1, %s4
  %s7 = scalar_select 0, %s6, %s4
  %s9 = sshll.u32 %s0, 4
  %s10 = int_to_ptr.hbm [resolvable:$true] %s9
  %12 = dma.hbm_to_smem %s10, 16, [#allocation5], [#allocation4]
  %14 = dma.done [#allocation4], 16
  %15 = sfence
  $region1: #{tpu_custom_call.1} parent=0
    #allocation6 [shape = 'u8[65536]{0}', space=vmem, size = 0x10000, scoped, tag = 'input window, operand 2, single buffered']
    #allocation7 [shape = 's32[1]{0}', space=sflag, size = 0x4, scoped, tag = 'scoped memory for tpu_custom_call.1']
    #allocation8 [shape = 's32[1]{0}', space=sflag, size = 0x4, scoped, tag = 'scoped memory for tpu_custom_call.1']
    #allocation9 [shape = 'u8[8192]{0}', space=vmem, size = 0x2000, scoped, tag = 'output window, operand 0, single buffered']
    %16 = vsyncpa [#allocation7], 0
    %17 = vsyncpa [#allocation8], 0
    // Predicated region
    $region2: #{tpu_custom_call.1} parent=1 // pred_check
      _
    $region3: #{tpu_custom_call.1} parent=1 // pred_check_branch
      %19 = sbr.rel (0) target = $region5
    $region4: #{tpu_custom_call.1} parent=1 // pred_region
      %21 = vsyncadd [#allocation7], 0
      %s22 = sshll.u32 %s2, 4
      %s23 = int_to_ptr.hbm [resolvable:$true] %s22
      %s24 = sshll.u32 [#allocation6], 4
      %s25 = int_to_ptr.vmem [resolvable:$true] %s24
      %30 = dma.hbm_to_vmem [thread:$0]  %s23, 2048, %s25, [#allocation7], 128, 128, 8
    $region5: #{tpu_custom_call.1} parent=1 // pred_fallthru
      _
    // Predicated region
    $region6: #{tpu_custom_call.1} parent=1 // pred_check
      _
    $region7: #{tpu_custom_call.1} parent=1 // pred_check_branch
      %32 = sbr.rel (0) target = $region9
    $region8: #{tpu_custom_call.1} parent=1 // pred_region
      %34 = dma.done [#allocation7], 2048
    $region9: #{tpu_custom_call.1} parent=1 // pred_fallthru
      _
    %s35 = smul.u32 0, 16
    %s36 = sld [smem:[#allocation5 + %s35]]
    %s37 = scalar_lea.hbm %s1, %s36
    // Predicated region
    $region10: #{tpu_custom_call.1} parent=1 // pred_check
      _
    $region11: #{tpu_custom_call.1} parent=1 // pred_check_branch
      %39 = sbr.rel target = $region13
    $region12: #{tpu_custom_call.1} parent=1 // pred_region
      %40 = sst [smem:[#allocation12]] [#allocation11]
      %41 = sst [smem:[#allocation13]] [#allocation10]
    $region13: #{tpu_custom_call.1} parent=1 // pred_fallthru
      _
    %43 = shalt.err (0)
    %s45 = sshll.u32 %s37, 4
    %s46 = int_to_ptr.hbm [resolvable:$true] %s45
    %s47 = sshll.u32 [#allocation2], 4
    %s48 = int_to_ptr.vmem [resolvable:$true] %s47
    %50 = dma.hbm_to_vmem [thread:$0]  %s46, 16, %s48, [#allocation3]
    %s51 = sadd.s32 %s35, 1
    %s52 = sld [smem:[#allocation5 + %s51]]
    %s53 = scalar_lea.hbm %s1, %s52
    %s54 = scalar_lea.vmem [#allocation2], 1
    // Predicated region
    $region14: #{tpu_custom_call.1} parent=1 // pred_check
      _
    $region15: #{tpu_custom_call.1} parent=1 // pred_check_branch
      %56 = sbr.rel target = $region17
    $region16: #{tpu_custom_call.1} parent=1 // pred_region
      %57 = sst [smem:[#allocation12]] [#allocation15]
      %58 = sst [smem:[#allocation13]] [#allocation14]
    $region17: #{tpu_custom_call.1} parent=1 // pred_fallthru
      _
    %60 = shalt.err (0)
    %s62 = sshll.u32 %s53, 4
    %s63 = int_to_ptr.hbm [resolvable:$true] %s62
    %s64 = sshll.u32 %s54, 4
    %s65 = int_to_ptr.vmem [resolvable:$true] %s64
    %67 = dma.hbm_to_vmem [thread:$0]  %s63, 16, %s65, [#allocation3]
    %s68 = sadd.s32 %s35, 2
    %s69 = sld [smem:[#allocation5 + %s68]]
    %s70 = scalar_lea.hbm %s1, %s69
    %s71 = scalar_lea.vmem [#allocation2], 2
    // Predicated region
    $region18: #{tpu_custom_call.1} parent=1 // pred_check
      _
    $region19: #{tpu_custom_call.1} parent=1 // pred_check_branch
      %73 = sbr.rel target = $region21
    $region20: #{tpu_custom_call.1} parent=1 // pred_region
      %74 = sst [smem:[#allocation12]] [#allocation17]
      %75 = sst [smem:[#allocation13]] [#allocation16]
    $region21: #{tpu_custom_call.1} parent=1 // pred_fallthru
      _
    %77 = shalt.err (0)
    %s79 = sshll.u32 %s70, 4
    %s80 = int_to_ptr.hbm [resolvable:$true] %s79
    %s81 = sshll.u32 %s71, 4
    %s82 = int_to_ptr.vmem [resolvable:$true] %s81
    %84 = dma.hbm_to_vmem [thread:$0]  %s80, 16, %s82, [#allocation3]
    %s85 = sadd.s32 %s35, 3
    %s86 = sld [smem:[#allocation5 + %s85]]
    %s87 = scalar_lea.hbm %s1, %s86
    %s88 = scalar_lea.vmem [#allocation2], 3
    // Predicated region
    $region22: #{tpu_custom_call.1} parent=1 // pred_check
      _
    $region23: #{tpu_custom_call.1} parent=1 // pred_check_branch
      %90 = sbr.rel target = $region25
    $region24: #{tpu_custom_call.1} parent=1 // pred_region
      %91 = sst [smem:[#allocation12]] [#allocation19]
      %92 = sst [smem:[#allocation13]] [#allocation18]
    $region25: #{tpu_custom_call.1} parent=1 // pred_fallthru
      _
    %94 = shalt.err (0)
    %s96 = sshll.u32 %s87, 4
    %s97 = int_to_ptr.hbm [resolvable:$true] %s96
    %s98 = sshll.u32 %s88, 4
    %s99 = int_to_ptr.vmem [resolvable:$true] %s98
    %101 = dma.hbm_to_vmem [thread:$0]  %s97, 16, %s99, [#allocation3]
    %s102 = sadd.s32 %s35, 4
    %s103 = sld [smem:[#allocation5 + %s102]]
    %s104 = scalar_lea.hbm %s1, %s103
    %s105 = scalar_lea.vmem [#allocation2], 4
    // Predicated region
    $region26: #{tpu_custom_call.1} parent=1 // pred_check
      _
    $region27: #{tpu_custom_call.1} parent=1 // pred_check_branch
      %107 = sbr.rel target = $region29
    $region28: #{tpu_custom_call.1} parent=1 // pred_region
      %108 = sst [smem:[#allocation12]] [#allocation21]
      %109 = sst [smem:[#allocation13]] [#allocation20]
    $region29: #{tpu_custom_call.1} parent=1 // pred_fallthru
      _
    %111 = shalt.err (0)
    %s113 = sshll.u32 %s104, 4
    %s114 = int_to_ptr.hbm [resolvable:$true] %s113
    %s115 = sshll.u32 %s105, 4
    %s116 = int_to_ptr.vmem [resolvable:$true] %s115
    %118 = dma.hbm_to_vmem [thread:$0]  %s114, 16, %s116, [#allocation3]
    %s119 = sadd.s32 %s35, 5
    %s120 = sld [smem:[#allocation5 + %s119]]
    %s121 = scalar_lea.hbm %s1, %s120
    %s122 = scalar_lea.vmem [#allocation2], 5
    // Predicated region
    $region30: #{tpu_custom_call.1} parent=1 // pred_check
      _
    $region31: #{tpu_custom_call.1} parent=1 // pred_check_branch
      %124 = sbr.rel target = $region33
    $region32: #{tpu_custom_call.1} parent=1 // pred_region
      %125 = sst [smem:[#allocation12]] [#allocation23]
      %126 = sst [smem:[#allocation13]] [#allocation22]
    $region33: #{tpu_custom_call.1} parent=1 // pred_fallthru
      _
    %128 = shalt.err (0)
    %s130 = sshll.u32 %s121, 4
    %s131 = int_to_ptr.hbm [resolvable:$true] %s130
    %s132 = sshll.u32 %s122, 4
    %s133 = int_to_ptr.vmem [resolvable:$true] %s132
    %135 = dma.hbm_to_vmem [thread:$0]  %s131, 16, %s133, [#allocation3]
    %s136 = sadd.s32 %s35, 6
    %s137 = sld [smem:[#allocation5 + %s136]]
    %s138 = scalar_lea.hbm %s1, %s137
    %s139 = scalar_lea.vmem [#allocation2], 6
    // Predicated region
    $region34: #{tpu_custom_call.1} parent=1 // pred_check
      _
    $region35: #{tpu_custom_call.1} parent=1 // pred_check_branch
      %141 = sbr.rel target = $region37
    $region36: #{tpu_custom_call.1} parent=1 // pred_region
      %142 = sst [smem:[#allocation12]] [#allocation25]
      %143 = sst [smem:[#allocation13]] [#allocation24]
    $region37: #{tpu_custom_call.1} parent=1 // pred_fallthru
      _
    %145 = shalt.err (0)
    %s147 = sshll.u32 %s138, 4
    %s148 = int_to_ptr.hbm [resolvable:$true] %s147
    %s149 = sshll.u32 %s139, 4
    %s150 = int_to_ptr.vmem [resolvable:$true] %s149
    %152 = dma.hbm_to_vmem [thread:$0]  %s148, 16, %s150, [#allocation3]
    %s153 = sadd.s32 %s35, 7
    %s154 = sld [smem:[#allocation5 + %s153]]
    %s155 = scalar_lea.hbm %s1, %s154
    %s156 = scalar_lea.vmem [#allocation2], 7
    // Predicated region
    $region38: #{tpu_custom_call.1} parent=1 // pred_check
      _
    $region39: #{tpu_custom_call.1} parent=1 // pred_check_branch
      %158 = sbr.rel target = $region41
    $region40: #{tpu_custom_call.1} parent=1 // pred_region
      %159 = sst [smem:[#allocation12]] [#allocation27]
      %160 = sst [smem:[#allocation13]] [#allocation26]
    $region41: #{tpu_custom_call.1} parent=1 // pred_fallthru
      _
    %162 = shalt.err (0)
    %s164 = sshll.u32 %s155, 4
    %s165 = int_to_ptr.hbm [resolvable:$true] %s164
    %s166 = sshll.u32 %s156, 4
    %s167 = int_to_ptr.vmem [resolvable:$true] %s166
    %169 = dma.hbm_to_vmem [thread:$0]  %s165, 16, %s167, [#allocation3]
    %s170 = sadd.s32 %s35, 8
    %s171 = sld [smem:[#allocation5 + %s170]]
    %s172 = scalar_lea.hbm %s1, %s171
    %s173 = scalar_lea.vmem [#allocation2], 8
    // Predicated region
    $region42: #{tpu_custom_call.1} parent=1 // pred_check
      _
    $region43: #{tpu_custom_call.1} parent=1 // pred_check_branch
      %175 = sbr.rel target = $region45
    $region44: #{tpu_custom_call.1} parent=1 // pred_region
      %176 = sst [smem:[#allocation12]] [#allocation29]
      %177 = sst [smem:[#allocation13]] [#allocation28]
    $region45: #{tpu_custom_call.1} parent=1 // pred_fallthru
      _
    %179 = shalt.err (0)
    %s181 = sshll.u32 %s172, 4
    %s182 = int_to_ptr.hbm [resolvable:$true] %s181
    %s183 = sshll.u32 %s173, 4
    %s184 = int_to_ptr.vmem [resolvable:$true] %s183
    %186 = dma.hbm_to_vmem [thread:$0]  %s182, 16, %s184, [#allocation3]
    %s187 = sadd.s32 %s35, 9
    %s188 = sld [smem:[#allocation5 + %s187]]
    %s189 = scalar_lea.hbm %s1, %s188
    %s190 = scalar_lea.vmem [#allocation2], 9
    // Predicated region
    $region46: #{tpu_custom_call.1} parent=1 // pred_check
      _
    $region47: #{tpu_custom_call.1} parent=1 // pred_check_branch
      %192 = sbr.rel target = $region49
    $region48: #{tpu_custom_call.1} parent=1 // pred_region
      %193 = sst [smem:[#allocation12]] [#allocation31]
      %194 = sst [smem:[#allocation13]] [#allocation30]
    $region49: #{tpu_custom_call.1} parent=1 // pred_fallthru
      _
    %196 = shalt.err (0)
    %s198 = sshll.u32 %s189, 4
    %s199 = int_to_ptr.hbm [resolvable:$true] %s198
    %s200 = sshll.u32 %s190, 4
    %s201 = int_to_ptr.vmem [resolvable:$true] %s200
    %203 = dma.hbm_to_vmem [thread:$0]  %s199, 16, %s201, [#allocation3]
    %s204 = sadd.s32 %s35, 10
    %s205 = sld [smem:[#allocation5 + %s204]]
    %s206 = scalar_lea.hbm %s1, %s205
    %s207 = scalar_lea.vmem [#allocation2], 10
    // Predicated region
    $region50: #{tpu_custom_call.1} parent=1 // pred_check
      _
    $region51: #{tpu_custom_call.1} parent=1 // pred_check_branch
      %209 = sbr.rel target = $region53
    $region52: #{tpu_custom_call.1} parent=1 // pred_region
      %210 = sst [smem:[#allocation12]] [#allocation33]
      %211 = sst [smem:[#allocation13]] [#allocation32]
    $region53: #{tpu_custom_call.1} parent=1 // pred_fallthru
      _
    %213 = shalt.err (0)
    %s215 = sshll.u32 %s206, 4
    %s216 = int_to_ptr.hbm [resolvable:$true] %s215
    %s217 = sshll.u32 %s207, 4
    %s218 = int_to_ptr.vmem [resolvable:$true] %s217
    %220 = dma.hbm_to_vmem [thread:$0]  %s216, 16, %s218, [#allocation3]
    %s221 = sadd.s32 %s35, 11
    %s222 = sld [smem:[#allocation5 + %s221]]
    %s223 = scalar_lea.hbm %s1, %s222
    %s224 = scalar_lea.vmem [#allocation2], 11
    // Predicated region
    $region54: #{tpu_custom_call.1} parent=1 // pred_check
      _
    $region55: #{tpu_custom_call.1} parent=1 // pred_check_branch
      %226 = sbr.rel target = $region57
    $region56: #{tpu_custom_call.1} parent=1 // pred_region
      %227 = sst [smem:[#allocation12]] [#allocation35]
      %228 = sst [smem:[#allocation13]] [#allocation34]
    $region57: #{tpu_custom_call.1} parent=1 // pred_fallthru
      _
    %230 = shalt.err (0)
    %s232 = sshll.u32 %s223, 4
    %s233 = int_to_ptr.hbm [resolvable:$true] %s232
    %s234 = sshll.u32 %s224, 4
    %s235 = int_to_ptr.vmem [resolvable:$true] %s234
    %237 = dma.hbm_to_vmem [thread:$0]  %s233, 16, %s235, [#allocation3]
    %s238 = sadd.s32 %s35, 12
    %s239 = sld [smem:[#allocation5 + %s238]]
    %s240 = scalar_lea.hbm %s1, %s239
    %s241 = scalar_lea.vmem [#allocation2], 12
    // Predicated region
    $region58: #{tpu_custom_call.1} parent=1 // pred_check
      _
    $region59: #{tpu_custom_call.1} parent=1 // pred_check_branch
      %243 = sbr.rel target = $region61
    $region60: #{tpu_custom_call.1} parent=1 // pred_region
      %244 = sst [smem:[#allocation12]] [#allocation37]
      %245 = sst [smem:[#allocation13]] [#allocation36]
    $region61: #{tpu_custom_call.1} parent=1 // pred_fallthru
      _
    %247 = shalt.err (0)
    %s249 = sshll.u32 %s240, 4
    %s250 = int_to_ptr.hbm [resolvable:$true] %s249
    %s251 = sshll.u32 %s241, 4
    %s252 = int_to_ptr.vmem [resolvable:$true] %s251
    %254 = dma.hbm_to_vmem [thread:$0]  %s250, 16, %s252, [#allocation3]
    %s255 = sadd.s32 %s35, 13
    %s256 = sld [smem:[#allocation5 + %s255]]
    %s257 = scalar_lea.hbm %s1, %s256
    %s258 = scalar_lea.vmem [#allocation2], 13
    // Predicated region
    $region62: #{tpu_custom_call.1} parent=1 // pred_check
      _
    $region63: #{tpu_custom_call.1} parent=1 // pred_check_branch
      %260 = sbr.rel target = $region65
    $region64: #{tpu_custom_call.1} parent=1 // pred_region
      %261 = sst [smem:[#allocation12]] [#allocation39]
      %262 = sst [smem:[#allocation13]] [#allocation38]
    $region65: #{tpu_custom_call.1} parent=1 // pred_fallthru
      _
    %264 = shalt.err (0)
    %s266 = sshll.u32 %s257, 4
    %s267 = int_to_ptr.hbm [resolvable:$true] %s266
    %s268 = sshll.u32 %s258, 4
    %s269 = int_to_ptr.vmem [resolvable:$true] %s268
    %271 = dma.hbm_to_vmem [thread:$0]  %s267, 16, %s269, [#allocation3]
    %s272 = sadd.s32 %s35, 14
    %s273 = sld [smem:[#allocation5 + %s272]]
    %s274 = scalar_lea.hbm %s1, %s273
    %s275 = scalar_lea.vmem [#allocation2], 14
    // Predicated region
    $region66: #{tpu_custom_call.1} parent=1 // pred_check
      _
    $region67: #{tpu_custom_call.1} parent=1 // pred_check_branch
      %277 = sbr.rel target = $region69
    $region68: #{tpu_custom_call.1} parent=1 // pred_region
      %278 = sst [smem:[#allocation12]] [#allocation41]
      %279 = sst [smem:[#allocation13]] [#allocation40]
    $region69: #{tpu_custom_call.1} parent=1 // pred_fallthru
      _
    %281 = shalt.err (0)
    %s283 = sshll.u32 %s274, 4
    %s284 = int_to_ptr.hbm [resolvable:$true] %s283
    %s285 = sshll.u32 %s275, 4
    %s286 = int_to_ptr.vmem [resolvable:$true] %s285
    %288 = dma.hbm_to_vmem [thread:$0]  %s284, 16, %s286, [#allocation3]
    %s289 = sadd.s32 %s35, 15
    %s290 = sld [smem:[#allocation5 + %s289]]
    %s291 = scalar_lea.hbm %s1, %s290
    %s292 = scalar_lea.vmem [#allocation2], 15
    // Predicated region
    $region70: #{tpu_custom_call.1} parent=1 // pred_check
      _
    $region71: #{tpu_custom_call.1} parent=1 // pred_check_branch
      %294 = sbr.rel target = $region73
    $region72: #{tpu_custom_call.1} parent=1 // pred_region
      %295 = sst [smem:[#allocation12]] [#allocation43]
      %296 = sst [smem:[#allocation13]] [#allocation42]
    $region73: #{tpu_custom_call.1} parent=1 // pred_fallthru
      _
    %298 = shalt.err (0)
    %s300 = sshll.u32 %s291, 4
    %s301 = int_to_ptr.hbm [resolvable:$true] %s300
    %s302 = sshll.u32 %s292, 4
    %s303 = int_to_ptr.vmem [resolvable:$true] %s302
    %305 = dma.hbm_to_vmem [thread:$0]  %s301, 16, %s303, [#allocation3]
    %307 = dma.done [#allocation3], 16
    %309 = dma.done [#allocation3], 16
    %311 = dma.done [#allocation3], 16
    %313 = dma.done [#allocation3], 16
    %315 = dma.done [#allocation3], 16
    %317 = dma.done [#allocation3], 16
    %319 = dma.done [#allocation3], 16
    %321 = dma.done [#allocation3], 16
    %323 = dma.done [#allocation3], 16
    %325 = dma.done [#allocation3], 16
    %327 = dma.done [#allocation3], 16
    %329 = dma.done [#allocation3], 16
    %331 = dma.done [#allocation3], 16
    %333 = dma.done [#allocation3], 16
    %335 = dma.done [#allocation3], 16
    %337 = dma.done [#allocation3], 16
    %v338 = vld [vmem:[#allocation2] sm:$0xff]
    %v339 = vld [vmem:[#allocation2 + $0x8] sm:$0xff]
    %v340 = vld [vmem:[#allocation6] sm:$0xff]
    %v341 = vld [vmem:[#allocation6 + $0x8] sm:$0xff]
    %v342 = vld [vmem:[#allocation6 + $0x10] sm:$0xff]
    %v343 = vld [vmem:[#allocation6 + $0x18] sm:$0xff]
    %v344 = vld [vmem:[#allocation6 + $0x20] sm:$0xff]
    %v345 = vld [vmem:[#allocation6 + $0x28] sm:$0xff]
    %v346 = vld [vmem:[#allocation6 + $0x30] sm:$0xff]
    %v347 = vld [vmem:[#allocation6 + $0x38] sm:$0xff]
    %v348 = vld [vmem:[#allocation6 + $0x40] sm:$0xff]
    %v349 = vld [vmem:[#allocation6 + $0x48] sm:$0xff]
    %v350 = vld [vmem:[#allocation6 + $0x50] sm:$0xff]
    %v351 = vld [vmem:[#allocation6 + $0x58] sm:$0xff]
    %v352 = vld [vmem:[#allocation6 + $0x60] sm:$0xff]
    %v353 = vld [vmem:[#allocation6 + $0x68] sm:$0xff]
    %v354 = vld [vmem:[#allocation6 + $0x70] sm:$0xff]
    %v355 = vld [vmem:[#allocation6 + $0x78] sm:$0xff]
    %356 = vmatpush.msra.mxu0 %v355
    %357 = vmatpush.msra.mxu0 %v354
    %358 = vmatpush.msra.mxu0 %v353
    %359 = vmatpush.msra.mxu0 %v352
    %360 = vmatpush.msra.mxu0 %v351
    %361 = vmatpush.msra.mxu0 %v350
    %362 = vmatpush.msra.mxu0 %v349
    %363 = vmatpush.msra.mxu0 %v348
    %364 = vmatpush.msra.mxu0 %v347
    %365 = vmatpush.msra.mxu0 %v346
    %366 = vmatpush.msra.mxu0 %v345
    %367 = vmatpush.msra.mxu0 %v344
    %368 = vmatpush.msra.mxu0 %v343
    %369 = vmatpush.msra.mxu0 %v342
    %370 = vmatpush.msra.mxu0 %v341
    %371 = vmatpush.msra.mxu0 %v340
    %372 = vmatmul.f32.gmra.mxu0 %v338
    %v373 = vpop.f32.mrf.mxu0
    %v374 = vadd.f32 0.0, %v373
    %375 = vmatmul.f32.gmra.mxu0 %v339
    %v376 = vpop.f32.mrf.mxu0
    %v377 = vadd.f32 0.0, %v376
    %378 = vdwg.mxu0
    %379 = vst [vmem:[#allocation9] sm:$0xff] %v374
    %380 = vst [vmem:[#allocation9 + $0x8] sm:$0xff] %v377
    // Predicated region
    $region74: #{tpu_custom_call.1} parent=1 // pred_check
      _
    $region75: #{tpu_custom_call.1} parent=1 // pred_check_branch
      %382 = sbr.rel (0) target = $region77
    $region76: #{tpu_custom_call.1} parent=1 // pred_region
      %384 = vsyncadd [#allocation8], 0
      %s385 = sshll.u32 [#allocation9], 4
      %s386 = int_to_ptr.vmem [resolvable:$true] %s385
      %s387 = sshll.u32 %s3, 4
      %s388 = int_to_ptr.hbm [resolvable:$true] %s387
      %393 = dma.vmem_to_hbm [thread:$0]  %s386, 256, %s388, [#allocation8], 128, 128, 8
    $region77: #{tpu_custom_call.1} parent=1 // pred_fallthru
      _
    // Predicated region
    $region78: #{tpu_custom_call.1} parent=1 // pred_check
      _
    $region79: #{tpu_custom_call.1} parent=1 // pred_check_branch
      %395 = sbr.rel (0) target = $region81
    $region80: #{tpu_custom_call.1} parent=1 // pred_region
      %397 = dma.done [#allocation8], 256
    $region81: #{tpu_custom_call.1} parent=1 // pred_fallthru
      _
    %398 = vsyncpa [#allocation7], 1
    %399 = vsyncpa [#allocation8], 1
  %400 = vsyncmov [#allocation3]
  %s401 = vpop.sfrf %400
  %p402 = scmp.eq.s32.totalorder %s401, 0
  %p403 = pneg %p402
  %405 = shalt.err (%p403)

</llo_original>
